<compile_context>
chip_gen: v6e
topology: v6e:2x2x1
jax: 0.10.0
libtpu: 0.0.40
codegen_flags: <defaults>
</compile_context>

<pallas_src>
import functools

import jax
import jax.numpy as jnp
from jax.experimental import pallas as pl
from jax.experimental.pallas import tpu as pltpu


def _depthwise_kernel(x_ref, w_ref, o_ref, *, K, W, HW, C_in, mult):
    # x_ref: (1, C_in, HW)          one batch element, spatial flattened (lane-dense)
    # w_ref: (mult, K*K, C_in, 1)   per-tap, per-input-channel weight columns
    # o_ref: (1, mult, C_in, HW)    full-frame accumulators (cropped in wrapper)
    x = x_ref[0].astype(jnp.float32)            # load once, upcast once: (C_in, HW)
    wv = w_ref[...].astype(jnp.float32)         # tiny, cast once: (mult, K*K, C_in, 1)

    accs = [jnp.zeros((C_in, HW), jnp.float32) for _ in range(mult)]
    t = 0
    for kh in range(K):
        for kw in range(K):
            delta = kh * W + kw
            if delta == 0:
                sh = x
            else:
                # shift the flat frame left by `delta` lanes; the zero-fill only
                # lands on positions that the VALID crop discards.
                sh = jnp.concatenate(
                    [x[:, delta:], jnp.zeros((C_in, delta), jnp.float32)], axis=1
                )
            for m in range(mult):
                # (C_in, 1) weight column broadcast along lanes: plain VALU MAC.
                accs[m] = accs[m] + sh * wv[m, t]
            t += 1

    for m in range(mult):
        o_ref[0, m] = accs[m].astype(o_ref.dtype)


def separable_conv2d(x, w):
    """Grouped conv2d with groups == C_in (PyTorch SeparableConv2d.forward)."""
    N, C_in, H, W = x.shape
    C_out, w_cin, K, K2 = w.shape
    assert w_cin == 1 and K == K2
    assert C_out % C_in == 0, "out_channels*depth must be divisible by in_channels"
    mult = C_out // C_in          # output chan o = c*mult + m reads input chan c
    OH, OW = H - K + 1, W - K + 1
    HW = H * W

    # --- wrapper-side layout plumbing (XLA), not compute ---------------------
    # flatten spatial so the lane axis is H*W (multiple of 128 here: 256)
    x_flat = x.reshape(N, C_in, HW)
    # weights -> (mult, tap, C_in, 1) columns:  w_cols[m, kh*K+kw, c, 0] == w[c*mult+m, 0, kh, kw]
    w_cols = (
        w.reshape(C_in, mult, K, K)
         .transpose(1, 2, 3, 0)
         .reshape(mult, K * K, C_in, 1)
    )

    kernel = functools.partial(
        _depthwise_kernel, K=K, W=W, HW=HW, C_in=C_in, mult=mult
    )

    flops = 2 * N * C_out * OH * OW * K * K
    bytes_accessed = (
        x_flat.size * x_flat.dtype.itemsize
        + w_cols.size * w_cols.dtype.itemsize
        + N * mult * C_in * HW * x.dtype.itemsize
    )

    y = pl.pallas_call(
        kernel,
        out_shape=jax.ShapeDtypeStruct((N, mult, C_in, HW), x.dtype),
        grid=(N,),
        in_specs=[
            # whole (C_in, H*W) slab for this batch element, lane-dense
            pl.BlockSpec((1, C_in, HW), lambda n: (n, 0, 0)),
            # entire weight tensor, constant index map (one tiny fetch)
            pl.BlockSpec((mult, K * K, C_in, 1), lambda n: (0, 0, 0, 0)),
        ],
        out_specs=pl.BlockSpec((1, mult, C_in, HW), lambda n: (n, 0, 0, 0)),
        compiler_params=pltpu.CompilerParams(
            dimension_semantics=("parallel",)   # keeps both v7x TCs busy (extent N)
        ),
        cost_estimate=pl.CostEstimate(
            flops=flops, transcendentals=0, bytes_accessed=bytes_accessed
        ),
    )(x_flat, w_cols)

    # back to NCHW, interleave (c, m) -> o = c*mult + m, crop VALID window
    y = y.transpose(0, 2, 1, 3).reshape(N, C_out, H, W)
    return y[:, :, :OH, :OW]
    # NOTE: at realistic H*W / C this tiling would split HW into 128-multiple
    # row bands (with a (K-1)-row halo) to respect v7x's 64 MiB VMEM.


if __name__ == "__main__":
    # Module hyperparameters (small, consistent with the PyTorch __init__).
    in_channels, out_channels, depth, kernel_size = 4, 4, 2, 3
    C_out = out_channels * depth  # 8

    key = jax.random.PRNGKey(0)
    kx, kw = jax.random.split(key)

    # Input: NCHW, batch=2, channels=4, spatial=16.
    x = jax.random.normal(kx, (2, in_channels, 16, 16), dtype=jnp.float32)

    # Deterministic weight init mimicking nn.Conv2d kaiming-uniform:
    # fan_in = (in_channels / groups) * K * K = K * K.
    fan_in = kernel_size * kernel_size
    bound = 1.0 / (fan_in ** 0.5)
    w = jax.random.uniform(
        kw, (C_out, 1, kernel_size, kernel_size),
        minval=-bound, maxval=bound, dtype=jnp.float32,
    )

    out = jax.block_until_ready(separable_conv2d(x, w))
    assert out.shape == (2, C_out, 14, 14), out.shape

    # Cross-check against XLA's grouped conv (same semantics as the PyTorch op).
    ref = jax.lax.conv_general_dilated(
        x, w, window_strides=(1, 1), padding="VALID",
        dimension_numbers=("NCHW", "OIHW", "NCHW"),
        feature_group_count=in_channels,
    )
    assert jnp.allclose(out, ref, atol=1e-5, rtol=1e-5)

    print("KERNEL_OK")
</pallas_src>

<mosaic_0001>
module attributes {stable_mosaic.version = 11 : i64} {
  func.func @_depthwise_kernel(%arg0: i32, %arg1: memref<1x4x256xf32, #tpu.memory_space<vmem>>, %arg2: memref<2x9x4x1xf32, #tpu.memory_space<vmem>>, %arg3: memref<1x2x4x256xf32, #tpu.memory_space<vmem>>) attributes {dimension_semantics = [#tpu.dimension_semantics<parallel>], iteration_bounds = array<i64: 2>, scalar_prefetch = 0 : i64, scratch_operands = 0 : i64, tpu.core_type = #tpu.core_type<tc>, window_params = [{transform_indices = @transform_0, window_bounds = array<i64: 1, 4, 256>}, {pipeline_mode = #tpu.pipeline_mode<synchronous>, transform_indices = @transform_1, window_bounds = array<i64: 2, 9, 4, 1>}, {transform_indices = @transform_2, window_bounds = array<i64: 1, 2, 4, 256>}]} {
    %c0 = arith.constant 0 : index
    %c0_0 = arith.constant 0 : index
    %c0_1 = arith.constant 0 : index
    %0 = vector.load %arg1[%c0, %c0_0, %c0_1] : memref<1x4x256xf32, #tpu.memory_space<vmem>>, vector<1x4x256xf32>
    %1 = vector.shape_cast %0 : vector<1x4x256xf32> to vector<4x256xf32>
    %c0_2 = arith.constant 0 : index
    %c0_3 = arith.constant 0 : index
    %c0_4 = arith.constant 0 : index
    %c0_5 = arith.constant 0 : index
    %2 = vector.load %arg2[%c0_2, %c0_3, %c0_4, %c0_5] : memref<2x9x4x1xf32, #tpu.memory_space<vmem>>, vector<2x9x4x1xf32>
    %cst = arith.constant 0.000000e+00 : f32
    %3 = vector.broadcast %cst : f32 to vector<4x256xf32>
    %cst_6 = arith.constant 0.000000e+00 : f32
    %4 = vector.broadcast %cst_6 : f32 to vector<4x256xf32>
    %5 = vector.extract_strided_slice %2 {offsets = [0, 0, 0, 0], sizes = [1, 1, 4, 1], strides = [1, 1, 1, 1]} : vector<2x9x4x1xf32> to vector<1x1x4x1xf32>
    %6 = vector.shape_cast %5 : vector<1x1x4x1xf32> to vector<4x1xf32>
    %7 = vector.broadcast %6 : vector<4x1xf32> to vector<4x256xf32>
    %8 = arith.mulf %1, %7 : vector<4x256xf32>
    %9 = arith.addf %3, %8 : vector<4x256xf32>
    %10 = vector.extract_strided_slice %2 {offsets = [1, 0, 0, 0], sizes = [1, 1, 4, 1], strides = [1, 1, 1, 1]} : vector<2x9x4x1xf32> to vector<1x1x4x1xf32>
    %11 = vector.shape_cast %10 : vector<1x1x4x1xf32> to vector<4x1xf32>
    %12 = vector.broadcast %11 : vector<4x1xf32> to vector<4x256xf32>
    %13 = arith.mulf %1, %12 : vector<4x256xf32>
    %14 = arith.addf %4, %13 : vector<4x256xf32>
    %15 = vector.extract_strided_slice %1 {offsets = [0, 1], sizes = [4, 255], strides = [1, 1]} : vector<4x256xf32> to vector<4x255xf32>
    %cst_7 = arith.constant 0.000000e+00 : f32
    %16 = vector.broadcast %cst_7 : f32 to vector<4x1xf32>
    %17 = tpu.concatenate %15, %16 in 1 : vector<4x255xf32>, vector<4x1xf32> -> vector<4x256xf32>
    %18 = vector.extract_strided_slice %2 {offsets = [0, 1, 0, 0], sizes = [1, 1, 4, 1], strides = [1, 1, 1, 1]} : vector<2x9x4x1xf32> to vector<1x1x4x1xf32>
    %19 = vector.shape_cast %18 : vector<1x1x4x1xf32> to vector<4x1xf32>
    %20 = vector.broadcast %19 : vector<4x1xf32> to vector<4x256xf32>
    %21 = arith.mulf %17, %20 : vector<4x256xf32>
    %22 = arith.addf %9, %21 : vector<4x256xf32>
    %23 = vector.extract_strided_slice %2 {offsets = [1, 1, 0, 0], sizes = [1, 1, 4, 1], strides = [1, 1, 1, 1]} : vector<2x9x4x1xf32> to vector<1x1x4x1xf32>
    %24 = vector.shape_cast %23 : vector<1x1x4x1xf32> to vector<4x1xf32>
    %25 = vector.broadcast %24 : vector<4x1xf32> to vector<4x256xf32>
    %26 = arith.mulf %17, %25 : vector<4x256xf32>
    %27 = arith.addf %14, %26 : vector<4x256xf32>
    %28 = vector.extract_strided_slice %1 {offsets = [0, 2], sizes = [4, 254], strides = [1, 1]} : vector<4x256xf32> to vector<4x254xf32>
    %cst_8 = arith.constant 0.000000e+00 : f32
    %29 = vector.broadcast %cst_8 : f32 to vector<4x2xf32>
    %30 = tpu.concatenate %28, %29 in 1 : vector<4x254xf32>, vector<4x2xf32> -> vector<4x256xf32>
    %31 = vector.extract_strided_slice %2 {offsets = [0, 2, 0, 0], sizes = [1, 1, 4, 1], strides = [1, 1, 1, 1]} : vector<2x9x4x1xf32> to vector<1x1x4x1xf32>
    %32 = vector.shape_cast %31 : vector<1x1x4x1xf32> to vector<4x1xf32>
    %33 = vector.broadcast %32 : vector<4x1xf32> to vector<4x256xf32>
    %34 = arith.mulf %30, %33 : vector<4x256xf32>
    %35 = arith.addf %22, %34 : vector<4x256xf32>
    %36 = vector.extract_strided_slice %2 {offsets = [1, 2, 0, 0], sizes = [1, 1, 4, 1], strides = [1, 1, 1, 1]} : vector<2x9x4x1xf32> to vector<1x1x4x1xf32>
    %37 = vector.shape_cast %36 : vector<1x1x4x1xf32> to vector<4x1xf32>
    %38 = vector.broadcast %37 : vector<4x1xf32> to vector<4x256xf32>
    %39 = arith.mulf %30, %38 : vector<4x256xf32>
    %40 = arith.addf %27, %39 : vector<4x256xf32>
    %41 = vector.extract_strided_slice %1 {offsets = [0, 16], sizes = [4, 240], strides = [1, 1]} : vector<4x256xf32> to vector<4x240xf32>
    %cst_9 = arith.constant 0.000000e+00 : f32
    %42 = vector.broadcast %cst_9 : f32 to vector<4x16xf32>
    %43 = tpu.concatenate %41, %42 in 1 : vector<4x240xf32>, vector<4x16xf32> -> vector<4x256xf32>
    %44 = vector.extract_strided_slice %2 {offsets = [0, 3, 0, 0], sizes = [1, 1, 4, 1], strides = [1, 1, 1, 1]} : vector<2x9x4x1xf32> to vector<1x1x4x1xf32>
    %45 = vector.shape_cast %44 : vector<1x1x4x1xf32> to vector<4x1xf32>
    %46 = vector.broadcast %45 : vector<4x1xf32> to vector<4x256xf32>
    %47 = arith.mulf %43, %46 : vector<4x256xf32>
    %48 = arith.addf %35, %47 : vector<4x256xf32>
    %49 = vector.extract_strided_slice %2 {offsets = [1, 3, 0, 0], sizes = [1, 1, 4, 1], strides = [1, 1, 1, 1]} : vector<2x9x4x1xf32> to vector<1x1x4x1xf32>
    %50 = vector.shape_cast %49 : vector<1x1x4x1xf32> to vector<4x1xf32>
    %51 = vector.broadcast %50 : vector<4x1xf32> to vector<4x256xf32>
    %52 = arith.mulf %43, %51 : vector<4x256xf32>
    %53 = arith.addf %40, %52 : vector<4x256xf32>
    %54 = vector.extract_strided_slice %1 {offsets = [0, 17], sizes = [4, 239], strides = [1, 1]} : vector<4x256xf32> to vector<4x239xf32>
    %cst_10 = arith.constant 0.000000e+00 : f32
    %55 = vector.broadcast %cst_10 : f32 to vector<4x17xf32>
    %56 = tpu.concatenate %54, %55 in 1 : vector<4x239xf32>, vector<4x17xf32> -> vector<4x256xf32>
    %57 = vector.extract_strided_slice %2 {offsets = [0, 4, 0, 0], sizes = [1, 1, 4, 1], strides = [1, 1, 1, 1]} : vector<2x9x4x1xf32> to vector<1x1x4x1xf32>
    %58 = vector.shape_cast %57 : vector<1x1x4x1xf32> to vector<4x1xf32>
    %59 = vector.broadcast %58 : vector<4x1xf32> to vector<4x256xf32>
    %60 = arith.mulf %56, %59 : vector<4x256xf32>
    %61 = arith.addf %48, %60 : vector<4x256xf32>
    %62 = vector.extract_strided_slice %2 {offsets = [1, 4, 0, 0], sizes = [1, 1, 4, 1], strides = [1, 1, 1, 1]} : vector<2x9x4x1xf32> to vector<1x1x4x1xf32>
    %63 = vector.shape_cast %62 : vector<1x1x4x1xf32> to vector<4x1xf32>
    %64 = vector.broadcast %63 : vector<4x1xf32> to vector<4x256xf32>
    %65 = arith.mulf %56, %64 : vector<4x256xf32>
    %66 = arith.addf %53, %65 : vector<4x256xf32>
    %67 = vector.extract_strided_slice %1 {offsets = [0, 18], sizes = [4, 238], strides = [1, 1]} : vector<4x256xf32> to vector<4x238xf32>
    %cst_11 = arith.constant 0.000000e+00 : f32
    %68 = vector.broadcast %cst_11 : f32 to vector<4x18xf32>
    %69 = tpu.concatenate %67, %68 in 1 : vector<4x238xf32>, vector<4x18xf32> -> vector<4x256xf32>
    %70 = vector.extract_strided_slice %2 {offsets = [0, 5, 0, 0], sizes = [1, 1, 4, 1], strides = [1, 1, 1, 1]} : vector<2x9x4x1xf32> to vector<1x1x4x1xf32>
    %71 = vector.shape_cast %70 : vector<1x1x4x1xf32> to vector<4x1xf32>
    %72 = vector.broadcast %71 : vector<4x1xf32> to vector<4x256xf32>
    %73 = arith.mulf %69, %72 : vector<4x256xf32>
    %74 = arith.addf %61, %73 : vector<4x256xf32>
    %75 = vector.extract_strided_slice %2 {offsets = [1, 5, 0, 0], sizes = [1, 1, 4, 1], strides = [1, 1, 1, 1]} : vector<2x9x4x1xf32> to vector<1x1x4x1xf32>
    %76 = vector.shape_cast %75 : vector<1x1x4x1xf32> to vector<4x1xf32>
    %77 = vector.broadcast %76 : vector<4x1xf32> to vector<4x256xf32>
    %78 = arith.mulf %69, %77 : vector<4x256xf32>
    %79 = arith.addf %66, %78 : vector<4x256xf32>
    %80 = vector.extract_strided_slice %1 {offsets = [0, 32], sizes = [4, 224], strides = [1, 1]} : vector<4x256xf32> to vector<4x224xf32>
    %cst_12 = arith.constant 0.000000e+00 : f32
    %81 = vector.broadcast %cst_12 : f32 to vector<4x32xf32>
    %82 = tpu.concatenate %80, %81 in 1 : vector<4x224xf32>, vector<4x32xf32> -> vector<4x256xf32>
    %83 = vector.extract_strided_slice %2 {offsets = [0, 6, 0, 0], sizes = [1, 1, 4, 1], strides = [1, 1, 1, 1]} : vector<2x9x4x1xf32> to vector<1x1x4x1xf32>
    %84 = vector.shape_cast %83 : vector<1x1x4x1xf32> to vector<4x1xf32>
    %85 = vector.broadcast %84 : vector<4x1xf32> to vector<4x256xf32>
    %86 = arith.mulf %82, %85 : vector<4x256xf32>
    %87 = arith.addf %74, %86 : vector<4x256xf32>
    %88 = vector.extract_strided_slice %2 {offsets = [1, 6, 0, 0], sizes = [1, 1, 4, 1], strides = [1, 1, 1, 1]} : vector<2x9x4x1xf32> to vector<1x1x4x1xf32>
    %89 = vector.shape_cast %88 : vector<1x1x4x1xf32> to vector<4x1xf32>
    %90 = vector.broadcast %89 : vector<4x1xf32> to vector<4x256xf32>
    %91 = arith.mulf %82, %90 : vector<4x256xf32>
    %92 = arith.addf %79, %91 : vector<4x256xf32>
    %93 = vector.extract_strided_slice %1 {offsets = [0, 33], sizes = [4, 223], strides = [1, 1]} : vector<4x256xf32> to vector<4x223xf32>
    %cst_13 = arith.constant 0.000000e+00 : f32
    %94 = vector.broadcast %cst_13 : f32 to vector<4x33xf32>
    %95 = tpu.concatenate %93, %94 in 1 : vector<4x223xf32>, vector<4x33xf32> -> vector<4x256xf32>
    %96 = vector.extract_strided_slice %2 {offsets = [0, 7, 0, 0], sizes = [1, 1, 4, 1], strides = [1, 1, 1, 1]} : vector<2x9x4x1xf32> to vector<1x1x4x1xf32>
    %97 = vector.shape_cast %96 : vector<1x1x4x1xf32> to vector<4x1xf32>
    %98 = vector.broadcast %97 : vector<4x1xf32> to vector<4x256xf32>
    %99 = arith.mulf %95, %98 : vector<4x256xf32>
    %100 = arith.addf %87, %99 : vector<4x256xf32>
    %101 = vector.extract_strided_slice %2 {offsets = [1, 7, 0, 0], sizes = [1, 1, 4, 1], strides = [1, 1, 1, 1]} : vector<2x9x4x1xf32> to vector<1x1x4x1xf32>
    %102 = vector.shape_cast %101 : vector<1x1x4x1xf32> to vector<4x1xf32>
    %103 = vector.broadcast %102 : vector<4x1xf32> to vector<4x256xf32>
    %104 = arith.mulf %95, %103 : vector<4x256xf32>
    %105 = arith.addf %92, %104 : vector<4x256xf32>
    %106 = vector.extract_strided_slice %1 {offsets = [0, 34], sizes = [4, 222], strides = [1, 1]} : vector<4x256xf32> to vector<4x222xf32>
    %cst_14 = arith.constant 0.000000e+00 : f32
    %107 = vector.broadcast %cst_14 : f32 to vector<4x34xf32>
    %108 = tpu.concatenate %106, %107 in 1 : vector<4x222xf32>, vector<4x34xf32> -> vector<4x256xf32>
    %109 = vector.extract_strided_slice %2 {offsets = [0, 8, 0, 0], sizes = [1, 1, 4, 1], strides = [1, 1, 1, 1]} : vector<2x9x4x1xf32> to vector<1x1x4x1xf32>
    %110 = vector.shape_cast %109 : vector<1x1x4x1xf32> to vector<4x1xf32>
    %111 = vector.broadcast %110 : vector<4x1xf32> to vector<4x256xf32>
    %112 = arith.mulf %108, %111 : vector<4x256xf32>
    %113 = arith.addf %100, %112 : vector<4x256xf32>
    %114 = vector.extract_strided_slice %2 {offsets = [1, 8, 0, 0], sizes = [1, 1, 4, 1], strides = [1, 1, 1, 1]} : vector<2x9x4x1xf32> to vector<1x1x4x1xf32>
    %115 = vector.shape_cast %114 : vector<1x1x4x1xf32> to vector<4x1xf32>
    %116 = vector.broadcast %115 : vector<4x1xf32> to vector<4x256xf32>
    %117 = arith.mulf %108, %116 : vector<4x256xf32>
    %118 = arith.addf %105, %117 : vector<4x256xf32>
    %c0_15 = arith.constant 0 : index
    %c0_16 = arith.constant 0 : index
    %c0_17 = arith.constant 0 : index
    %c0_18 = arith.constant 0 : index
    %119 = vector.load %arg3[%c0_15, %c0_16, %c0_17, %c0_18] : memref<1x2x4x256xf32, #tpu.memory_space<vmem>>, vector<1x1x4x256xf32>
    %120 = vector.shape_cast %119 : vector<1x1x4x256xf32> to vector<4x256xf32>
    %121 = vector.shape_cast %113 : vector<4x256xf32> to vector<1x1x4x256xf32>
    tpu.vector_store %arg3[%c0_15, %c0_16, %c0_17, %c0_18], %121 {strides = array<i32>} : memref<1x2x4x256xf32, #tpu.memory_space<vmem>>, vector<1x1x4x256xf32>,
    %c0_19 = arith.constant 0 : index
    %c1 = arith.constant 1 : index
    %c0_20 = arith.constant 0 : index
    %c0_21 = arith.constant 0 : index
    %122 = vector.load %arg3[%c0_19, %c1, %c0_20, %c0_21] : memref<1x2x4x256xf32, #tpu.memory_space<vmem>>, vector<1x1x4x256xf32>
    %123 = vector.shape_cast %122 : vector<1x1x4x256xf32> to vector<4x256xf32>
    %124 = vector.shape_cast %118 : vector<4x256xf32> to vector<1x1x4x256xf32>
    tpu.vector_store %arg3[%c0_19, %c1, %c0_20, %c0_21], %124 {strides = array<i32>} : memref<1x2x4x256xf32, #tpu.memory_space<vmem>>, vector<1x1x4x256xf32>,
    return
  }
  func.func @transform_0(%arg0: i32) -> (i32, i32, i32) {
    %c0_i32 = arith.constant 0 : i32
    %c0_i32_0 = arith.constant 0 : i32
    %c0_i32_1 = arith.constant 0 : i32
    return %arg0, %c0_i32, %c0_i32_0 : i32, i32, i32
  }
  func.func @transform_1(%arg0: i32) -> (i32, i32, i32, i32) {
    %c0_i32 = arith.constant 0 : i32
    %c0_i32_0 = arith.constant 0 : i32
    %c0_i32_1 = arith.constant 0 : i32
    %c0_i32_2 = arith.constant 0 : i32
    %c0_i32_3 = arith.constant 0 : i32
    return %c0_i32, %c0_i32_0, %c0_i32_1, %c0_i32_2 : i32, i32, i32, i32
  }
  func.func @transform_2(%arg0: i32) -> (i32, i32, i32, i32) {
    %c0_i32 = arith.constant 0 : i32
    %c0_i32_0 = arith.constant 0 : i32
    %c0_i32_1 = arith.constant 0 : i32
    %c0_i32_2 = arith.constant 0 : i32
    return %arg0, %c0_i32, %c0_i32_0, %c0_i32_1 : i32, i32, i32, i32
  }
}

</mosaic_0001>

<llo_original>
// kernel: tpu_custom_call.1
$region0: #{tpu_custom_call.1}
  #allocation0 [shape = 'u32[]', space=smem, size = 0x4, offset = 0x4, fixed_abs, tag = 'smem constant byte address 0x4 - core index']
  #allocation1 [shape = 'u32[144,128]{1,0:T(1,128)}', space=vmem, size = 0x12000, scoped, tag = 'internal scratch']
  %s0 = inlined_call_operand.vmem [shape: f32[2,4,256], index: 0, kind: input, shape index: {}]
  %s1 = inlined_call_operand.vmem [shape: f32[2,9,4,1], index: 1, kind: input, shape index: {}]
  %s2 = inlined_call_operand.hbm [shape: f32[2,2,4,256], index: 2, kind: output, shape index: {}]
  %s3 = sld [smem:[#allocation0]]
  $region41: #{tpu_custom_call.1} parent=0
    _
  %s5 = ssub.s32 1, %s3
  %s6 = scalar_select 0, %s5, %s3
  $region1: #{tpu_custom_call.1} parent=0
    #allocation2 [shape = 'u8[16384]{0}', space=vmem, size = 0x4000, scoped, tag = 'output window, operand 0']
    #allocation3 [shape = 's32[2]{0}', space=sflag, size = 0x8, scoped, tag = 'scoped memory for tpu_custom_call.1']
    %7 = vsyncpa [#allocation3], 0
    %s8 = scalar_lea.sflag [#allocation3], 1
    %9 = vsyncpa %s8, 0
    loop: start=0, step=1, limit=4
    $region2: #{tpu_custom_call.1} parent=1 // loop_pre_header
      _
    $region3: #{tpu_custom_call.1} parent=1 // loop_header
      %s11 = sphi 0, %s15
      %p12 = scmp.ge.s32.totalorder %s11, 4
      %s21 = sphi 0, %s23
      %s24 = sphi 0, %s21
      %s25 = sphi 0, %s24
      %s41 = sphi 0, %s25
      %s45 = sphi 0, %s45
      %s47 = sphi 0, %s45
      %s48 = sphi 0, %s47
      %s62 = sphi 0, %s48
      %s68 = sphi 0, %s70
      %s71 = sphi 0, %s68
      %s72 = sphi 0, %s71
      %s88 = sphi 0, %s72
    $region4: #{tpu_custom_call.1} parent=1 // loop_header_branch
      %14 = sbr.rel (%p12) target = $region8
    $region5: #{tpu_custom_call.1} parent=1 // loop_body
      %s16 = ssub.s32 %s11, 1
      %s17 = ssub.s32 %s11, 2
      %s18 = sadd.s32 %s11, 1
      %s19 = ssub.s32 %s11, %s18
      %p20 = scmp.eq.s32.totalorder %s19, 0
      %s22 = sadd.s32 %s21, 1
      %s23 = scalar_select %p20, %s21, %s22
      %p26 = pneg %p20
      %p27 = scmp.eq.s32.totalorder %s11, 1
      %p28 = por %p26, %p27
      %p29 = scmp.ne.s32.totalorder %s21, %s24
      %p30 = scmp.eq.s32.totalorder %s11, 0
      %p31 = por %p29, %p30
      %p32 = scmp.ne.s32.totalorder %s21, %s24
      %p33 = scmp.eq.s32.totalorder %s16, 1
      %p34 = por %p32, %p33
      %p35 = scmp.ne.s32.totalorder %s24, %s25
      %p36 = scmp.eq.s32.totalorder %s16, 0
      %p37 = por %p35, %p36
      %p38 = scmp.ne.s32.totalorder %s24, %s25
      %p39 = scmp.eq.s32.totalorder %s17, 1
      %p40 = por %p38, %p39
      %p42 = scmp.ne.s32.totalorder %s25, %s41
      %p43 = scmp.eq.s32.totalorder %s17, 0
      %p44 = por %p42, %p43
      %s46 = sadd.s32 %s45, 1
      %p49 = scmp.eq.s32.totalorder %s11, 1
      %p50 = scmp.ne.s32.totalorder %s45, %s47
      %p51 = scmp.eq.s32.totalorder %s11, 0
      %p52 = por %p50, %p51
      %p53 = scmp.ne.s32.totalorder %s45, %s47
      %p54 = scmp.eq.s32.totalorder %s16, 1
      %p55 = por %p53, %p54
      %p56 = scmp.ne.s32.totalorder %s47, %s48
      %p57 = scmp.eq.s32.totalorder %s16, 0
      %p58 = por %p56, %p57
      %p59 = scmp.ne.s32.totalorder %s47, %s48
      %p60 = scmp.eq.s32.totalorder %s17, 1
      %p61 = por %p59, %p60
      %p63 = scmp.ne.s32.totalorder %s48, %s62
      %p64 = scmp.eq.s32.totalorder %s17, 0
      %p65 = por %p63, %p64
      %s66 = ssub.s32 %s11, %s18
      %p67 = scmp.eq.s32.totalorder %s66, 0
      %s69 = sadd.s32 %s68, 1
      %s70 = scalar_select %p67, %s68, %s69
      %p73 = pneg %p67
      %p74 = scmp.eq.s32.totalorder %s11, 1
      %p75 = por %p73, %p74
      %p76 = scmp.ne.s32.totalorder %s68, %s71
      %p77 = scmp.eq.s32.totalorder %s11, 0
      %p78 = por %p76, %p77
      %p79 = scmp.ne.s32.totalorder %s68, %s71
      %p80 = scmp.eq.s32.totalorder %s16, 1
      %p81 = por %p79, %p80
      %p82 = scmp.ne.s32.totalorder %s71, %s72
      %p83 = scmp.eq.s32.totalorder %s16, 0
      %p84 = por %p82, %p83
      %p85 = scmp.ne.s32.totalorder %s71, %s72
      %p86 = scmp.eq.s32.totalorder %s17, 1
      %p87 = por %p85, %p86
      %p89 = scmp.ne.s32.totalorder %s72, %s88
      %p90 = scmp.eq.s32.totalorder %s17, 0
      %p91 = por %p89, %p90
      %p92 = scmp.le.s32.totalorder 1, %s11
      %p93 = scmp.lt.s32.totalorder %s11, 3
      %p94 = pnand %p92, %p93
      %p95 = pneg %p94
      // Predicated region
      $region9: #{tpu_custom_call.1} parent=5 // pred_check
        _
      $region10: #{tpu_custom_call.1} parent=5 // pred_check_branch
        %97 = sbr.rel (%p94) target = $region12
      $region11: #{tpu_custom_call.1} parent=5 // pred_region
        %s98 = ssub.s32 %s11, 1
        // Predicated region
        $region13: #{tpu_custom_call.1} parent=11 // pred_check
          %p99 = pneg %p58
        $region14: #{tpu_custom_call.1} parent=11 // pred_check_branch
          %101 = sbr.rel (%p99) target = $region16
        $region15: #{tpu_custom_call.1} parent=11 // pred_region
          _
        $region16: #{tpu_custom_call.1} parent=11 // pred_fallthru
          _
      $region12: #{tpu_custom_call.1} parent=5 // pred_fallthru
        _
      %p102 = scmp.lt.s32.totalorder %s11, 2
      // Predicated region
      $region17: #{tpu_custom_call.1} parent=5 // pred_check
        %p103 = pneg %p102
      $region18: #{tpu_custom_call.1} parent=5 // pred_check_branch
        %105 = sbr.rel (%p103) target = $region20
      $region19: #{tpu_custom_call.1} parent=5 // pred_region
        // Predicated region
        $region21: #{tpu_custom_call.1} parent=19 // pred_check
          %p106 = pneg %p31
        $region22: #{tpu_custom_call.1} parent=19 // pred_check_branch
          %108 = sbr.rel (%p106) target = $region24
        $region23: #{tpu_custom_call.1} parent=19 // pred_region
          %p109 = scmp.lt.s32.totalorder %s11, 1
          %s110 = scalar_select %p109, %s11, 1
          %s111 = smul.addr %s110, 2
          %s112 = smul.addr %s111, 4
          %s113 = scalar_lea.vmem %s0, %s112
        $region24: #{tpu_custom_call.1} parent=19 // pred_fallthru
          _
      $region20: #{tpu_custom_call.1} parent=5 // pred_fallthru
        _
      %p114 = scmp.le.s32.totalorder 1, %s11
      %p115 = scmp.lt.s32.totalorder %s11, 3
      %p116 = pnand %p114, %p115
      %p117 = pneg %p116
      // Predicated region
      $region25: #{tpu_custom_call.1} parent=5 // pred_check
        _
      $region26: #{tpu_custom_call.1} parent=5 // pred_check_branch
        %119 = sbr.rel (%p116) target = $region28
      $region27: #{tpu_custom_call.1} parent=5 // pred_region
        %s120 = ssub.s32 %s11, 1
        %p121 = scmp.lt.s32.totalorder %s16, 1
        %s122 = scalar_select %p121, %s16, 1
        %s123 = smul.addr %s122, 2
        %s124 = smul.addr %s123, 4
        %s125 = scalar_lea.vmem %s0, %s124
        %p126 = pneg %p37
        %p127 = pneg %p34
        %p128 = pneg %p58
        %p129 = pneg %p55
        %p130 = pneg %p84
        %p131 = pneg %p81
        %s132 = sand.u32 %s71, 1
        %s133 = scalar_lea.sflag [#allocation3], %s132
        %s134 = sand.u32 %s71, 1
        %s135 = smul.addr %s134, 16
        %s136 = scalar_lea.vmem [#allocation2], %s135
        %p137 = scmp.lt.s32.totalorder %s16, 1
        %s138 = scalar_select %p137, %s16, 1
        %s139 = smul.addr %s138, 2
        %s140 = smul.addr %s139, 4
        %s141 = scalar_lea.vmem %s0, %s140
        %v142 = vld [vmem:[%s141] sm:$0xff]
        %v143 = vld [vmem:[%s1] sm:$0xf]
        %v144 = vld [vmem:[%s1 + $0x4] sm:$0xf]
        %v145 = vld [vmem:[%s1 + $0x8] sm:$0xf]
        %v146 = vld [vmem:[%s1 + $0xc] sm:$0xf]
        %v147 = vld [vmem:[%s1 + $0x10] sm:$0xf]
        %v148 = vld [vmem:[%s1 + $0x14] sm:$0xf]
        %v149 = vld [vmem:[%s1 + $0x18] sm:$0xf]
        %v150 = vld [vmem:[%s1 + $0x1c] sm:$0xf]
        %v151 = vld [vmem:[%s1 + $0x20] sm:$0xf]
        %v152 = vld [vmem:[%s1 + $0x24] sm:$0xf]
        %v153 = vld [vmem:[%s1 + $0x28] sm:$0xf]
        %v154 = vld [vmem:[%s1 + $0x2c] sm:$0xf]
        %v155 = vld [vmem:[%s1 + $0x30] sm:$0xf]
        %v156 = vld [vmem:[%s1 + $0x34] sm:$0xf]
        %v157 = vld [vmem:[%s1 + $0x38] sm:$0xf]
        %v158 = vld [vmem:[%s1 + $0x3c] sm:$0xf]
        %v159 = vld [vmem:[%s1 + $0x40] sm:$0xf]
        %v160 = vld [vmem:[%s1 + $0x44] sm:$0xf]
        %162 = vset.pattern.permute.xlu0 0
        %163 = vperm.xlu0 %162, %v143
        %v164 = vpop.permute.xlu0 %163
        %v166 = vunpack.c.l.s4 839922192
        %v167 = vunpack.c.0.s8 %v166
        %v168 = vlaneseq
        %v169 = vshrl.u32 %v168, 7
        %v170 = vsub.s32 %v167, %v169
        %v171 = vrot.slane %v164, %v170
        %v173 = vmul.f32 %v142, %v171
        %v174 = vadd.f32 %v173, 0.0
        %176 = vset.pattern.permute.xlu0 0
        %177 = vperm.xlu0 %176, %v152
        %v178 = vpop.permute.xlu0 %177
        %v180 = vunpack.c.l.s4 839922192
        %v181 = vunpack.c.0.s8 %v180
        %v182 = vlaneseq
        %v183 = vshrl.u32 %v182, 7
        %v184 = vsub.s32 %v181, %v183
        %v185 = vrot.slane %v178, %v184
        %v187 = vmul.f32 %v142, %v185
        %v188 = vadd.f32 %v187, 0.0
        %v190 = vcombine.high %v142, %v142
        %191 = vrot.lane.b32.xlu0 %v142, 127
        %v192 = vpop.permute.xlu0 %191
        %193 = vrot.lane.b32.xlu0 %v190, 127
        %v194 = vpop.permute.xlu0 %193
        %vm195 = vcmask 1039360
        %v196 = vsel %vm195, %v192, %v194
        %v199 = vsel %vm195, %v194, 0.0
        %201 = vset.pattern.permute.xlu0 0
        %202 = vperm.xlu0 %201, %v144
        %v203 = vpop.permute.xlu0 %202
        %v205 = vmul.f32 %v196, %v203
        %v206 = vmul.f32 %v199, %v203
        %v209 = vcombine.low %v205, %v206
        %v211 = vadd.f32 %v174, %v209
        %213 = vset.pattern.permute.xlu0 0
        %214 = vperm.xlu0 %213, %v153
        %v215 = vpop.permute.xlu0 %214
        %v217 = vmul.f32 %v196, %v215
        %v218 = vmul.f32 %v199, %v215
        %v221 = vcombine.low %v217, %v218
        %v223 = vadd.f32 %v188, %v221
        %224 = vrot.lane.b32.xlu0 %v142, 126
        %v225 = vpop.permute.xlu0 %224
        %226 = vrot.lane.b32.xlu0 %v190, 126
        %v227 = vpop.permute.xlu0 %226
        %vm228 = vcmask 1031168
        %v229 = vsel %vm228, %v225, %v227
        %v232 = vsel %vm228, %v227, 0.0
        %234 = vset.pattern.permute.xlu0 0
        %235 = vperm.xlu0 %234, %v145
        %v236 = vpop.permute.xlu0 %235
        %v238 = vmul.f32 %v229, %v236
        %v239 = vmul.f32 %v232, %v236
        %v242 = vcombine.low %v238, %v239
        %v244 = vadd.f32 %v211, %v242
        %246 = vset.pattern.permute.xlu0 0
        %247 = vperm.xlu0 %246, %v154
        %v248 = vpop.permute.xlu0 %247
        %v250 = vmul.f32 %v229, %v248
        %v251 = vmul.f32 %v232, %v248
        %v254 = vcombine.low %v250, %v251
        %v256 = vadd.f32 %v223, %v254
        %257 = vrot.lane.b32.xlu0 %v142, 112
        %v258 = vpop.permute.xlu0 %257
        %259 = vrot.lane.b32.xlu0 %v190, 112
        %v260 = vpop.permute.xlu0 %259
        %vm261 = vcmask 916480
        %v262 = vsel %vm261, %v258, %v260
        %v265 = vsel %vm261, %v260, 0.0
        %267 = vset.pattern.permute.xlu0 0
        %268 = vperm.xlu0 %267, %v146
        %v269 = vpop.permute.xlu0 %268
        %v271 = vmul.f32 %v262, %v269
        %v272 = vmul.f32 %v265, %v269
        %v275 = vcombine.low %v271, %v272
        %v277 = vadd.f32 %v244, %v275
        %279 = vset.pattern.permute.xlu0 0
        %280 = vperm.xlu0 %279, %v155
        %v281 = vpop.permute.xlu0 %280
        %v283 = vmul.f32 %v262, %v281
        %v284 = vmul.f32 %v265, %v281
        %v287 = vcombine.low %v283, %v284
        %v289 = vadd.f32 %v256, %v287
        %290 = vrot.lane.b32.xlu0 %v142, 111
        %v291 = vpop.permute.xlu0 %290
        %292 = vrot.lane.b32.xlu0 %v190, 111
        %v293 = vpop.permute.xlu0 %292
        %vm294 = vcmask 908288
        %v295 = vsel %vm294, %v291, %v293
        %v298 = vsel %vm294, %v293, 0.0
        %300 = vset.pattern.permute.xlu0 0
        %301 = vperm.xlu0 %300, %v147
        %v302 = vpop.permute.xlu0 %301
        %v304 = vmul.f32 %v295, %v302
        %v305 = vmul.f32 %v298, %v302
        %v308 = vcombine.low %v304, %v305
        %v310 = vadd.f32 %v277, %v308
        %312 = vset.pattern.permute.xlu0 0
        %313 = vperm.xlu0 %312, %v156
        %v314 = vpop.permute.xlu0 %313
        %v316 = vmul.f32 %v295, %v314
        %v317 = vmul.f32 %v298, %v314
        %v320 = vcombine.low %v316, %v317
        %v322 = vadd.f32 %v289, %v320
        %323 = vrot.lane.b32.xlu0 %v142, 110
        %v324 = vpop.permute.xlu0 %323
        %325 = vrot.lane.b32.xlu0 %v190, 110
        %v326 = vpop.permute.xlu0 %325
        %vm327 = vcmask 900096
        %v328 = vsel %vm327, %v324, %v326
        %v331 = vsel %vm327, %v326, 0.0
        %333 = vset.pattern.permute.xlu0 0
        %334 = vperm.xlu0 %333, %v148
        %v335 = vpop.permute.xlu0 %334
        %v337 = vmul.f32 %v328, %v335
        %v338 = vmul.f32 %v331, %v335
        %v341 = vcombine.low %v337, %v338
        %v343 = vadd.f32 %v310, %v341
        %345 = vset.pattern.permute.xlu0 0
        %346 = vperm.xlu0 %345, %v157
        %v347 = vpop.permute.xlu0 %346
        %v349 = vmul.f32 %v328, %v347
        %v350 = vmul.f32 %v331, %v347
        %v353 = vcombine.low %v349, %v350
        %v355 = vadd.f32 %v322, %v353
        %356 = vrot.lane.b32.xlu0 %v142, 96
        %v357 = vpop.permute.xlu0 %356
        %358 = vrot.lane.b32.xlu0 %v190, 96
        %v359 = vpop.permute.xlu0 %358
        %vm360 = vcmask 785408
        %v361 = vsel %vm360, %v357, %v359
        %v364 = vsel %vm360, %v359, 0.0
        %366 = vset.pattern.permute.xlu0 0
        %367 = vperm.xlu0 %366, %v149
        %v368 = vpop.permute.xlu0 %367
        %v370 = vmul.f32 %v361, %v368
        %v371 = vmul.f32 %v364, %v368
        %v374 = vcombine.low %v370, %v371
        %v376 = vadd.f32 %v343, %v374
        %378 = vset.pattern.permute.xlu0 0
        %379 = vperm.xlu0 %378, %v158
        %v380 = vpop.permute.xlu0 %379
        %v382 = vmul.f32 %v361, %v380
        %v383 = vmul.f32 %v364, %v380
        %v386 = vcombine.low %v382, %v383
        %v388 = vadd.f32 %v355, %v386
        %389 = vrot.lane.b32.xlu0 %v142, 95
        %v390 = vpop.permute.xlu0 %389
        %391 = vrot.lane.b32.xlu0 %v190, 95
        %v392 = vpop.permute.xlu0 %391
        %vm393 = vcmask 777216
        %v394 = vsel %vm393, %v390, %v392
        %v397 = vsel %vm393, %v392, 0.0
        %399 = vset.pattern.permute.xlu0 0
        %400 = vperm.xlu0 %399, %v150
        %v401 = vpop.permute.xlu0 %400
        %v403 = vmul.f32 %v394, %v401
        %v404 = vmul.f32 %v397, %v401
        %v407 = vcombine.low %v403, %v404
        %v409 = vadd.f32 %v376, %v407
        %411 = vset.pattern.permute.xlu0 0
        %412 = vperm.xlu0 %411, %v159
        %v413 = vpop.permute.xlu0 %412
        %v415 = vmul.f32 %v394, %v413
        %v416 = vmul.f32 %v397, %v413
        %v419 = vcombine.low %v415, %v416
        %v421 = vadd.f32 %v388, %v419
        %422 = vrot.lane.b32.xlu0 %v142, 94
        %v423 = vpop.permute.xlu0 %422
        %424 = vrot.lane.b32.xlu0 %v190, 94
        %v425 = vpop.permute.xlu0 %424
        %vm426 = vcmask 769024
        %v427 = vsel %vm426, %v423, %v425
        %v430 = vsel %vm426, %v425, 0.0
        %432 = vset.pattern.permute.xlu0 0
        %433 = vperm.xlu0 %432, %v151
        %v434 = vpop.permute.xlu0 %433
        %v436 = vmul.f32 %v427, %v434
        %v437 = vmul.f32 %v430, %v434
        %v440 = vcombine.low %v436, %v437
        %v442 = vadd.f32 %v409, %v440
        %444 = vset.pattern.permute.xlu0 0
        %445 = vperm.xlu0 %444, %v160
        %v446 = vpop.permute.xlu0 %445
        %v448 = vmul.f32 %v427, %v446
        %v449 = vmul.f32 %v430, %v446
        %v452 = vcombine.low %v448, %v449
        %v454 = vadd.f32 %v421, %v452
        %455 = vst [vmem:[%s136] sm:$0xff] %v442
        %s456 = scalar_lea.vmem %s136, 8 [#allocation2]
        %457 = vst [vmem:[%s456] sm:$0xff] %v454
        %s458 = sand.u32 %s71, 1
        %s459 = scalar_lea.sflag [#allocation3], %s458
        %s460 = sand.u32 %s71, 1
        %s461 = smul.addr %s460, 16
        %s462 = scalar_lea.vmem [#allocation2], %s461
        // Predicated region
        $region29: #{tpu_custom_call.1} parent=27 // pred_check
          %p463 = pneg %p81
        $region30: #{tpu_custom_call.1} parent=27 // pred_check_branch
          %465 = sbr.rel (%p463) target = $region32
        $region31: #{tpu_custom_call.1} parent=27 // pred_region
          %s467 = ssub.s32 256, 256
          %468 = vsyncadd %s459, %s467
          %s469 = smul.addr %s16, 4
          %s470 = smul.addr %s469, 64
          %s471 = scalar_lea.hbm %s2, %s470
          %s472 = sshll.u32 %s462, 4
          %s473 = int_to_ptr.vmem [resolvable:$true] %s472
          %478 = dma.vmem_to_hbm [thread:$0]  %s473, 256, %s471, %s459, 128, 128, 8
        $region32: #{tpu_custom_call.1} parent=27 // pred_fallthru
          _
      $region28: #{tpu_custom_call.1} parent=5 // pred_fallthru
        _
      %p479 = scmp.le.s32.totalorder 2, %s11
      // Predicated region
      $region33: #{tpu_custom_call.1} parent=5 // pred_check
        %p480 = pneg %p479
      $region34: #{tpu_custom_call.1} parent=5 // pred_check_branch
        %482 = sbr.rel (%p480) target = $region36
      $region35: #{tpu_custom_call.1} parent=5 // pred_region
        %s483 = ssub.s32 %s11, 2
        // Predicated region
        $region37: #{tpu_custom_call.1} parent=35 // pred_check
          %p484 = pneg %p87
        $region38: #{tpu_custom_call.1} parent=35 // pred_check_branch
          %486 = sbr.rel (%p484) target = $region40
        $region39: #{tpu_custom_call.1} parent=35 // pred_region
          %s487 = sand.u32 %s72, 1
          %s488 = scalar_lea.sflag [#allocation3], %s487
          %s489 = sand.u32 %s72, 1
          %s490 = smul.addr %s489, 16
          %s491 = scalar_lea.vmem [#allocation2], %s490
          %492 = dma.done %s488, 256
        $region40: #{tpu_custom_call.1} parent=35 // pred_fallthru
          _
      $region36: #{tpu_custom_call.1} parent=5 // pred_fallthru
        _
    $region6: #{tpu_custom_call.1} parent=1 // loop_footer
      %s15 = sadd.s32 1, %s11
    $region7: #{tpu_custom_call.1} parent=1 // loop_footer_branch
      %10 = sbr.rel target = $region3
    $region8: #{tpu_custom_call.1} parent=1 // loop_exit
      _
    %493 = vsyncpa [#allocation3], 1
    %s494 = scalar_lea.sflag [#allocation3], 1
    %495 = vsyncpa %s494, 1

</llo_original>
